<compile_context>
chip_gen: v6e
topology: v6e:2x2x1
jax: 0.10.0
libtpu: 0.0.40
codegen_flags: <defaults>
</compile_context>

<pallas_src>
import jax
import jax.numpy as jnp
import numpy as np
from jax.experimental import pallas as pl
from jax.experimental.pallas import tpu as pltpu


def _subband_lstm_kernel(x_ref, hx_ref, cx_ref, wx_t_ref, wh_t_ref, bias_ref,
                         hy_ref, cy_ref):
    """One grid step: batch_tile batches, all their sub-band rows in one matmul.

    x_ref:    [batch_tile*N, Fp]  bf16 rows (Fp = F zero-padded to 128)
    hx_ref:   [batch_tile, 1, H]  bf16
    cx_ref:   [batch_tile, 1, H]  f32
    wx_t_ref: [Fp, 4H]            bf16
    wh_t_ref: [H, 4H]             bf16
    bias_ref: [1, 4H]             f32 (b_ih + b_hh)
    hy_ref/cy_ref: [batch_tile, N, H] out_dtype (default bf16)
    """
    bt = cx_ref.shape[0]
    h = cx_ref.shape[-1]
    rows = x_ref.shape[0]
    n = rows // bt

    # Fat MXU matmul over all rows of this step (bf16 operands, f32 acc).
    xw = jnp.dot(x_ref[...], wx_t_ref[...],
                 preferred_element_type=jnp.float32)            # [bt*n, 4H]

    # Per-batch recurrence contribution, computed in-kernel (one small matmul).
    hw = jnp.dot(hx_ref[...].reshape(bt, h), wh_t_ref[...],
                 preferred_element_type=jnp.float32)            # [bt, 4H]
    gate_bias = (hw + bias_ref[...])[:, None, :]                # [bt, 1, 4H]

    def gate(k):
        # Lane-aligned slice (H % 128 == 0).  Only one [rows, H] f32 gate is
        # ever live -> no [rows, 4H] materialization / vreg spills.
        return (xw[:, k * h:(k + 1) * h].reshape(bt, n, h)
                + gate_bias[..., k * h:(k + 1) * h])

    def sigmoid(z):
        # One EUP push (tanh) instead of exp + reciprocal.
        return 0.5 * jnp.tanh(0.5 * z) + 0.5

    ingate = sigmoid(gate(0))
    forgetgate = sigmoid(gate(1))
    cellgate = jnp.tanh(gate(2))
    outgate = sigmoid(gate(3))

    cy = forgetgate * cx_ref[...] + ingate * cellgate           # cx broadcast over n
    hy = outgate * jnp.tanh(cy)

    hy_ref[...] = hy.astype(hy_ref.dtype)
    cy_ref[...] = cy.astype(cy_ref.dtype)


def prepare_subband_lstm_weights(weight_x, weight_h, bias_ih, bias_hh,
                                 compute_dtype=jnp.bfloat16, k_pad=128):
    """Transpose / cast / pad the weights ONCE (hoisted out of the per-frame step).

    Returns:
      wx_t: [Fp, 4H] compute_dtype, with the contraction dim zero-padded to a
            multiple of `k_pad` (128) for full-lane MXU K utilization.
      wh_t: [H, 4H]  compute_dtype (in-kernel recurrence operand).
      bias: [1, 4H]  f32 (b_ih + b_hh).
    """
    weight_x = jnp.asarray(weight_x)
    weight_h = jnp.asarray(weight_h)
    f = weight_x.shape[1]
    fp = max(k_pad, ((f + k_pad - 1) // k_pad) * k_pad) if k_pad else f
    wx_t = weight_x.T.astype(compute_dtype)                     # [F, 4H]
    if fp > f:
        wx_t = jnp.pad(wx_t, ((0, fp - f), (0, 0)))             # [Fp, 4H]
    wh_t = weight_h.T.astype(compute_dtype)                     # [H, 4H]
    bias = (jnp.asarray(bias_ih) + jnp.asarray(bias_hh)).astype(jnp.float32)[None, :]
    return wx_t, wh_t, bias


def _pick_batch_tile(B, N, target_rows=512):
    """Largest batch tile with <= target_rows matmul rows and >= 2 grid steps."""
    if N % 8 != 0:
        # Full-batch fallback: every block equals the full array dims, so the
        # (8, 128) block rule cannot be violated.
        # TODO(synk): pad N to a multiple of 8 instead (keeps grid > 1).
        return B
    best = 1
    for d in range(1, B + 1):
        if B % d != 0:
            continue
        if d * N > target_rows:
            continue
        if B >= 2 and (B // d) < 2:
            # Keep >= 2 "parallel" grid steps so both v7x TensorCores get work.
            continue
        best = d
    return best


def subband_lstm_cell_step(x, hx, cx, wx_t, wh_t, bias, *, batch_tile=None,
                           out_dtype=jnp.bfloat16):
    """Forward pass of SubBandLSTMCell with prepared weights.

    x:  [B, N, F]   (F == sub_band_size)
    hx: [B, H]      (H == alpha * sub_band_size == hidden_size)
    cx: [B, H]
    returns (hy, (hy, cy)) with hy, cy: [B, N, H] in out_dtype
    (pass out_dtype=jnp.float32 for exact PyTorch output dtype).
    """
    B, N, F = x.shape
    Fp, G = wx_t.shape
    H = wh_t.shape[0]
    assert G == 4 * H, "wx_t must be [Fp, 4H]"
    assert Fp >= F
    assert H % 128 == 0, "hidden_size must be a multiple of 128 for lane-aligned gate slices"
    assert hx.shape == (B, H) and cx.shape == (B, H)

    # Flatten rows, cast to bf16 and zero-pad the contraction dim to Fp.
    x2 = x.reshape(B * N, F).astype(wx_t.dtype)
    if Fp > F:
        x2 = jnp.pad(x2, ((0, 0), (0, Fp - F)))
    hx3 = hx.astype(wh_t.dtype)[:, None, :]                     # [B, 1, H] bf16
    cx3 = cx.astype(jnp.float32)[:, None, :]                    # [B, 1, H] f32

    if batch_tile is None:
        batch_tile = _pick_batch_tile(B, N)
    assert B % batch_tile == 0
    grid = (B // batch_tile,)

    # NOTE: Wx^T / Wh^T / bias have constant index_maps so the pipeline keeps
    # them resident; pipeline_mode=pl.Buffered(1) could reclaim ~260 KB of
    # double-buffer VMEM but is left at the default for portability.
    hy, cy = pl.pallas_call(
        _subband_lstm_kernel,
        out_shape=(jax.ShapeDtypeStruct((B, N, H), out_dtype),
                   jax.ShapeDtypeStruct((B, N, H), out_dtype)),
        grid_spec=pltpu.PrefetchScalarGridSpec(
            num_scalar_prefetch=0,
            grid=grid,
            in_specs=[
                pl.BlockSpec((batch_tile * N, Fp), lambda b: (b, 0)),   # x rows (bf16)
                pl.BlockSpec((batch_tile, 1, H), lambda b: (b, 0, 0)),  # hx (bf16)
                pl.BlockSpec((batch_tile, 1, H), lambda b: (b, 0, 0)),  # cx (f32)
                pl.BlockSpec((Fp, G), lambda b: (0, 0)),                # Wx^T (bf16)
                pl.BlockSpec((H, G), lambda b: (0, 0)),                 # Wh^T (bf16)
                pl.BlockSpec((1, G), lambda b: (0, 0)),                 # bias (f32)
            ],
            out_specs=[
                pl.BlockSpec((batch_tile, N, H), lambda b: (b, 0, 0)),  # hy
                pl.BlockSpec((batch_tile, N, H), lambda b: (b, 0, 0)),  # cy
            ],
        ),
        compiler_params=pltpu.CompilerParams(
            dimension_semantics=("parallel",)),
    )(x2, hx3, cx3, wx_t, wh_t, bias)

    return hy, (hy, cy)


def subband_lstm_cell(x, state, weight_x, weight_h, bias_ih, bias_hh,
                      out_dtype=jnp.bfloat16):
    """Convenience wrapper matching the PyTorch forward(input, state) signature.

    NOTE: for a real per-frame RNN loop call prepare_subband_lstm_weights()
    once and use subband_lstm_cell_step() to avoid re-transposing weights.
    """
    hx, cx = state
    wx_t, wh_t, bias = prepare_subband_lstm_weights(weight_x, weight_h, bias_ih, bias_hh)
    return subband_lstm_cell_step(x, hx, cx, wx_t, wh_t, bias, out_dtype=out_dtype)


def _reference(x, hx, cx, weight_x, weight_h, bias_ih, bias_hh, alpha):
    """Plain-JAX f32 transcription of the PyTorch forward (for verification)."""
    B, N, F = x.shape
    H = weight_x.shape[0] // 4
    xf = x.reshape(B * N, F)
    hxe = jnp.broadcast_to(hx[:, None, :], (B, N, alpha * F)).reshape(B * N, alpha * F)
    gates = (jnp.dot(xf, weight_x.T, precision=jax.lax.Precision.HIGHEST)
             + bias_ih
             + jnp.dot(hxe, weight_h.T, precision=jax.lax.Precision.HIGHEST)
             + bias_hh)
    i, f, g, o = jnp.split(gates, 4, axis=1)
    i = jax.nn.sigmoid(i)
    f = jax.nn.sigmoid(f)
    g = jnp.tanh(g)
    o = jax.nn.sigmoid(o)
    cxe = jnp.broadcast_to(cx[:, None, :], (B, N, H)).reshape(B * N, H)
    cy = f * cxe + i * g
    hy = o * jnp.tanh(cy)
    return hy.reshape(B, N, H), cy.reshape(B, N, H)


if __name__ == "__main__":
    # Small, MXU/lane-friendly shapes consistent with the module:
    #   sub_band_size F = 64, alpha = 2  =>  hidden_size H = alpha * F = 128
    #   batch B = 2, num_freqs N = 16
    B, N, F, alpha = 2, 16, 64, 2
    H = alpha * F  # hidden_size; module requires H == alpha * sub_band_size

    key = jax.random.PRNGKey(0)
    k = jax.random.split(key, 7)
    w_scale = 1.0 / np.sqrt(H)   # realistic init scale so gates stay O(1)
    x        = jax.random.normal(k[0], (B, N, F), dtype=jnp.float32)
    hx       = jax.random.normal(k[1], (B, H), dtype=jnp.float32)
    cx       = jax.random.normal(k[2], (B, H), dtype=jnp.float32)
    weight_x = jax.random.normal(k[3], (4 * H, F), dtype=jnp.float32) * w_scale
    weight_h = jax.random.normal(k[4], (4 * H, alpha * F), dtype=jnp.float32) * w_scale
    bias_ih  = jax.random.normal(k[5], (4 * H,), dtype=jnp.float32) * 0.1
    bias_hh  = jax.random.normal(k[6], (4 * H,), dtype=jnp.float32) * 0.1

    # Prepare (transpose + cast + pad) weights once, then run one cell step.
    wx_t, wh_t, bias = prepare_subband_lstm_weights(weight_x, weight_h, bias_ih, bias_hh)
    hy, (hy_state, cy_state) = subband_lstm_cell_step(x, hx, cx, wx_t, wh_t, bias)
    jax.block_until_ready((hy, hy_state, cy_state))

    hy_ref, cy_ref = _reference(x, hx, cx, weight_x, weight_h,
                                bias_ih, bias_hh, alpha)
    assert hy.shape == (B, N, H) and cy_state.shape == (B, N, H)

    hy_f32 = np.asarray(hy.astype(jnp.float32))
    cy_f32 = np.asarray(cy_state.astype(jnp.float32))
    # Tolerance covers bf16 MXU operands (f32 accumulation) + bf16 output storage.
    assert np.allclose(hy_f32, np.asarray(hy_ref), rtol=3e-2, atol=3e-2), (
        "hy mismatch, max abs diff %.4g" % np.max(np.abs(hy_f32 - np.asarray(hy_ref))))
    assert np.allclose(cy_f32, np.asarray(cy_ref), rtol=3e-2, atol=3e-2), (
        "cy mismatch, max abs diff %.4g" % np.max(np.abs(cy_f32 - np.asarray(cy_ref))))

    print("KERNEL_OK")
</pallas_src>

<mosaic_0001>
module attributes {stable_mosaic.version = 11 : i64} {
  func.func @_subband_lstm_kernel(%arg0: i32, %arg1: memref<16x128xbf16, #tpu.memory_space<vmem>>, %arg2: memref<1x1x128xbf16, #tpu.memory_space<vmem>>, %arg3: memref<1x1x128xf32, #tpu.memory_space<vmem>>, %arg4: memref<128x512xbf16, #tpu.memory_space<vmem>>, %arg5: memref<128x512xbf16, #tpu.memory_space<vmem>>, %arg6: memref<1x512xf32, #tpu.memory_space<vmem>>, %arg7: memref<1x16x128xbf16, #tpu.memory_space<vmem>>, %arg8: memref<1x16x128xbf16, #tpu.memory_space<vmem>>) attributes {dimension_semantics = [#tpu.dimension_semantics<parallel>], iteration_bounds = array<i64: 2>, scalar_prefetch = 0 : i64, scratch_operands = 0 : i64, tpu.core_type = #tpu.core_type<tc>, window_params = [{transform_indices = @transform_0, window_bounds = array<i64: 16, 128>}, {transform_indices = @transform_1, window_bounds = array<i64: 1, 1, 128>}, {transform_indices = @transform_2, window_bounds = array<i64: 1, 1, 128>}, {pipeline_mode = #tpu.pipeline_mode<synchronous>, transform_indices = @transform_3, window_bounds = array<i64: 128, 512>}, {pipeline_mode = #tpu.pipeline_mode<synchronous>, transform_indices = @transform_4, window_bounds = array<i64: 128, 512>}, {pipeline_mode = #tpu.pipeline_mode<synchronous>, transform_indices = @transform_5, window_bounds = array<i64: 1, 512>}, {transform_indices = @transform_6, window_bounds = array<i64: 1, 16, 128>}, {transform_indices = @transform_7, window_bounds = array<i64: 1, 16, 128>}]} {
    %c0 = arith.constant 0 : index
    %c0_0 = arith.constant 0 : index
    %0 = vector.load %arg1[%c0, %c0_0] : memref<16x128xbf16, #tpu.memory_space<vmem>>, vector<16x128xbf16>
    %c0_1 = arith.constant 0 : index
    %c0_2 = arith.constant 0 : index
    %1 = vector.load %arg4[%c0_1, %c0_2] : memref<128x512xbf16, #tpu.memory_space<vmem>>, vector<128x512xbf16>
    %cst = arith.constant dense<0.000000e+00> : vector<16x512xf32>
    %2 = tpu.matmul %0, %1, %cst {dimension_numbers = #tpu.dot_dimension_numbers<[1], [0], [0], [1], [0, 0, 1, 1], [], []>} : vector<16x128xbf16>, vector<128x512xbf16>, vector<16x512xf32> -> vector<16x512xf32>
    %c0_3 = arith.constant 0 : index
    %c0_4 = arith.constant 0 : index
    %c0_5 = arith.constant 0 : index
    %3 = vector.load %arg2[%c0_3, %c0_4, %c0_5] : memref<1x1x128xbf16, #tpu.memory_space<vmem>>, vector<1x1x128xbf16>
    %4 = vector.shape_cast %3 : vector<1x1x128xbf16> to vector<1x128xbf16>
    %c0_6 = arith.constant 0 : index
    %c0_7 = arith.constant 0 : index
    %5 = vector.load %arg5[%c0_6, %c0_7] : memref<128x512xbf16, #tpu.memory_space<vmem>>, vector<128x512xbf16>
    %cst_8 = arith.constant dense<0.000000e+00> : vector<1x512xf32>
    %6 = tpu.matmul %4, %5, %cst_8 {dimension_numbers = #tpu.dot_dimension_numbers<[1], [0], [0], [1], [0, 0, 1, 1], [], []>} : vector<1x128xbf16>, vector<128x512xbf16>, vector<1x512xf32> -> vector<1x512xf32>
    %c0_9 = arith.constant 0 : index
    %c0_10 = arith.constant 0 : index
    %7 = vector.load %arg6[%c0_9, %c0_10] : memref<1x512xf32, #tpu.memory_space<vmem>>, vector<1x512xf32>
    %8 = arith.addf %6, %7 : vector<1x512xf32>
    %9 = vector.shape_cast %8 : vector<1x512xf32> to vector<1x1x512xf32>
    %10 = vector.extract_strided_slice %2 {offsets = [0, 0], sizes = [16, 128], strides = [1, 1]} : vector<16x512xf32> to vector<16x128xf32>
    %11 = vector.shape_cast %10 : vector<16x128xf32> to vector<1x16x128xf32>
    %12 = vector.extract_strided_slice %9 {offsets = [0, 0, 0], sizes = [1, 1, 128], strides = [1, 1, 1]} : vector<1x1x512xf32> to vector<1x1x128xf32>
    %13 = vector.broadcast %12 : vector<1x1x128xf32> to vector<1x16x128xf32>
    %14 = arith.addf %11, %13 : vector<1x16x128xf32>
    %cst_11 = arith.constant 5.000000e-01 : f32
    %15 = vector.broadcast %cst_11 : f32 to vector<1x16x128xf32>
    %16 = arith.mulf %15, %14 : vector<1x16x128xf32>
    %17 = math.tanh %16 : vector<1x16x128xf32>
    %cst_12 = arith.constant 5.000000e-01 : f32
    %18 = vector.broadcast %cst_12 : f32 to vector<1x16x128xf32>
    %19 = arith.mulf %18, %17 : vector<1x16x128xf32>
    %cst_13 = arith.constant 5.000000e-01 : f32
    %20 = vector.broadcast %cst_13 : f32 to vector<1x16x128xf32>
    %21 = arith.addf %19, %20 : vector<1x16x128xf32>
    %22 = vector.extract_strided_slice %2 {offsets = [0, 128], sizes = [16, 128], strides = [1, 1]} : vector<16x512xf32> to vector<16x128xf32>
    %23 = vector.shape_cast %22 : vector<16x128xf32> to vector<1x16x128xf32>
    %24 = vector.extract_strided_slice %9 {offsets = [0, 0, 128], sizes = [1, 1, 128], strides = [1, 1, 1]} : vector<1x1x512xf32> to vector<1x1x128xf32>
    %25 = vector.broadcast %24 : vector<1x1x128xf32> to vector<1x16x128xf32>
    %26 = arith.addf %23, %25 : vector<1x16x128xf32>
    %cst_14 = arith.constant 5.000000e-01 : f32
    %27 = vector.broadcast %cst_14 : f32 to vector<1x16x128xf32>
    %28 = arith.mulf %27, %26 : vector<1x16x128xf32>
    %29 = math.tanh %28 : vector<1x16x128xf32>
    %cst_15 = arith.constant 5.000000e-01 : f32
    %30 = vector.broadcast %cst_15 : f32 to vector<1x16x128xf32>
    %31 = arith.mulf %30, %29 : vector<1x16x128xf32>
    %cst_16 = arith.constant 5.000000e-01 : f32
    %32 = vector.broadcast %cst_16 : f32 to vector<1x16x128xf32>
    %33 = arith.addf %31, %32 : vector<1x16x128xf32>
    %34 = vector.extract_strided_slice %2 {offsets = [0, 256], sizes = [16, 128], strides = [1, 1]} : vector<16x512xf32> to vector<16x128xf32>
    %35 = vector.shape_cast %34 : vector<16x128xf32> to vector<1x16x128xf32>
    %36 = vector.extract_strided_slice %9 {offsets = [0, 0, 256], sizes = [1, 1, 128], strides = [1, 1, 1]} : vector<1x1x512xf32> to vector<1x1x128xf32>
    %37 = vector.broadcast %36 : vector<1x1x128xf32> to vector<1x16x128xf32>
    %38 = arith.addf %35, %37 : vector<1x16x128xf32>
    %39 = math.tanh %38 : vector<1x16x128xf32>
    %40 = vector.extract_strided_slice %2 {offsets = [0, 384], sizes = [16, 128], strides = [1, 1]} : vector<16x512xf32> to vector<16x128xf32>
    %41 = vector.shape_cast %40 : vector<16x128xf32> to vector<1x16x128xf32>
    %42 = vector.extract_strided_slice %9 {offsets = [0, 0, 384], sizes = [1, 1, 128], strides = [1, 1, 1]} : vector<1x1x512xf32> to vector<1x1x128xf32>
    %43 = vector.broadcast %42 : vector<1x1x128xf32> to vector<1x16x128xf32>
    %44 = arith.addf %41, %43 : vector<1x16x128xf32>
    %cst_17 = arith.constant 5.000000e-01 : f32
    %45 = vector.broadcast %cst_17 : f32 to vector<1x16x128xf32>
    %46 = arith.mulf %45, %44 : vector<1x16x128xf32>
    %47 = math.tanh %46 : vector<1x16x128xf32>
    %cst_18 = arith.constant 5.000000e-01 : f32
    %48 = vector.broadcast %cst_18 : f32 to vector<1x16x128xf32>
    %49 = arith.mulf %48, %47 : vector<1x16x128xf32>
    %cst_19 = arith.constant 5.000000e-01 : f32
    %50 = vector.broadcast %cst_19 : f32 to vector<1x16x128xf32>
    %51 = arith.addf %49, %50 : vector<1x16x128xf32>
    %c0_20 = arith.constant 0 : index
    %c0_21 = arith.constant 0 : index
    %c0_22 = arith.constant 0 : index
    %52 = vector.load %arg3[%c0_20, %c0_21, %c0_22] : memref<1x1x128xf32, #tpu.memory_space<vmem>>, vector<1x1x128xf32>
    %53 = vector.broadcast %52 : vector<1x1x128xf32> to vector<1x16x128xf32>
    %54 = arith.mulf %33, %53 : vector<1x16x128xf32>
    %55 = arith.mulf %21, %39 : vector<1x16x128xf32>
    %56 = arith.addf %54, %55 : vector<1x16x128xf32>
    %57 = math.tanh %56 : vector<1x16x128xf32>
    %58 = arith.mulf %51, %57 : vector<1x16x128xf32>
    %59 = arith.truncf %58 : vector<1x16x128xf32> to vector<1x16x128xbf16>
    %c0_23 = arith.constant 0 : index
    %c0_24 = arith.constant 0 : index
    %c0_25 = arith.constant 0 : index
    %60 = vector.load %arg7[%c0_23, %c0_24, %c0_25] : memref<1x16x128xbf16, #tpu.memory_space<vmem>>, vector<1x16x128xbf16>
    tpu.vector_store %arg7[%c0_23, %c0_24, %c0_25], %59 {strides = array<i32>} : memref<1x16x128xbf16, #tpu.memory_space<vmem>>, vector<1x16x128xbf16>,
    %61 = arith.truncf %56 : vector<1x16x128xf32> to vector<1x16x128xbf16>
    %c0_26 = arith.constant 0 : index
    %c0_27 = arith.constant 0 : index
    %c0_28 = arith.constant 0 : index
    %62 = vector.load %arg8[%c0_26, %c0_27, %c0_28] : memref<1x16x128xbf16, #tpu.memory_space<vmem>>, vector<1x16x128xbf16>
    tpu.vector_store %arg8[%c0_26, %c0_27, %c0_28], %61 {strides = array<i32>} : memref<1x16x128xbf16, #tpu.memory_space<vmem>>, vector<1x16x128xbf16>,
    return
  }
  func.func @transform_0(%arg0: i32) -> (i32, i32) {
    %c0_i32 = arith.constant 0 : i32
    %c0_i32_0 = arith.constant 0 : i32
    return %arg0, %c0_i32 : i32, i32
  }
  func.func @transform_1(%arg0: i32) -> (i32, i32, i32) {
    %c0_i32 = arith.constant 0 : i32
    %c0_i32_0 = arith.constant 0 : i32
    %c0_i32_1 = arith.constant 0 : i32
    return %arg0, %c0_i32, %c0_i32_0 : i32, i32, i32
  }
  func.func @transform_2(%arg0: i32) -> (i32, i32, i32) {
    %c0_i32 = arith.constant 0 : i32
    %c0_i32_0 = arith.constant 0 : i32
    %c0_i32_1 = arith.constant 0 : i32
    return %arg0, %c0_i32, %c0_i32_0 : i32, i32, i32
  }
  func.func @transform_3(%arg0: i32) -> (i32, i32) {
    %c0_i32 = arith.constant 0 : i32
    %c0_i32_0 = arith.constant 0 : i32
    %c0_i32_1 = arith.constant 0 : i32
    return %c0_i32, %c0_i32_0 : i32, i32
  }
  func.func @transform_4(%arg0: i32) -> (i32, i32) {
    %c0_i32 = arith.constant 0 : i32
    %c0_i32_0 = arith.constant 0 : i32
    %c0_i32_1 = arith.constant 0 : i32
    return %c0_i32, %c0_i32_0 : i32, i32
  }
  func.func @transform_5(%arg0: i32) -> (i32, i32) {
    %c0_i32 = arith.constant 0 : i32
    %c0_i32_0 = arith.constant 0 : i32
    %c0_i32_1 = arith.constant 0 : i32
    return %c0_i32, %c0_i32_0 : i32, i32
  }
  func.func @transform_6(%arg0: i32) -> (i32, i32, i32) {
    %c0_i32 = arith.constant 0 : i32
    %c0_i32_0 = arith.constant 0 : i32
    %c0_i32_1 = arith.constant 0 : i32
    return %arg0, %c0_i32, %c0_i32_0 : i32, i32, i32
  }
  func.func @transform_7(%arg0: i32) -> (i32, i32, i32) {
    %c0_i32 = arith.constant 0 : i32
    %c0_i32_0 = arith.constant 0 : i32
    %c0_i32_1 = arith.constant 0 : i32
    return %arg0, %c0_i32, %c0_i32_0 : i32, i32, i32
  }
}

</mosaic_0001>

<llo_original>
// kernel: tpu_custom_call.1
$region0: #{tpu_custom_call.1}
  #allocation0 [shape = 'u32[]', space=smem, size = 0x4, offset = 0x4, fixed_abs, tag = 'smem constant byte address 0x4 - core index']
  #allocation1 [shape = 'u32[144,128]{1,0:T(1,128)}', space=vmem, size = 0x12000, scoped, tag = 'internal scratch']
  %s0 = inlined_call_operand.hbm [shape: bf16[32,128], index: 0, kind: input, shape index: {}]
  %s1 = inlined_call_operand.vmem [shape: bf16[2,1,128], index: 1, kind: input, shape index: {}]
  %s2 = inlined_call_operand.vmem [shape: f32[2,1,128], index: 2, kind: input, shape index: {}]
  %s3 = inlined_call_operand.hbm [shape: bf16[128,512], index: 3, kind: input, shape index: {}]
  %s4 = inlined_call_operand.hbm [shape: bf16[128,512], index: 4, kind: input, shape index: {}]
  %s5 = inlined_call_operand.vmem [shape: f32[1,512], index: 5, kind: input, shape index: {}]
  %s6 = inlined_call_operand.hbm [shape: bf16[2,16,128], index: 6, kind: output, shape index: {0}]
  %s7 = inlined_call_operand.hbm [shape: bf16[2,16,128], index: 7, kind: output, shape index: {1}]
  %8 = xla_tuple %s6, %s7
  %s9 = sld [smem:[#allocation0]]
  $region77: #{tpu_custom_call.1} parent=0
    _
  %s11 = ssub.s32 1, %s9
  %s12 = scalar_select 0, %s11, %s9
  $region1: #{tpu_custom_call.1} parent=0
    #allocation2 [shape = 'u8[8192]{0}', space=vmem, size = 0x2000, scoped, tag = 'input window, operand 0']
    #allocation3 [shape = 's32[2]{0}', space=sflag, size = 0x8, scoped, tag = 'scoped memory for tpu_custom_call.1']
    #allocation4 [shape = 's32[2]{0}', space=sflag, size = 0x8, scoped, tag = 'scoped memory for tpu_custom_call.1']
    #allocation5 [shape = 'u8[131072]{0}', space=vmem, size = 0x20000, scoped, tag = 'input window, operand 3, single buffered']
    #allocation6 [shape = 's32[1]{0}', space=sflag, size = 0x4, scoped, tag = 'scoped memory for tpu_custom_call.1']
    #allocation7 [shape = 'u8[131072]{0}', space=vmem, size = 0x20000, scoped, tag = 'input window, operand 4, single buffered']
    #allocation8 [shape = 'u8[8192]{0}', space=vmem, size = 0x2000, scoped, tag = 'output window, operand 0']
    #allocation9 [shape = 'u8[8192]{0}', space=vmem, size = 0x2000, scoped, tag = 'output window, operand 1']
    #allocation10 [shape = 's32[2]{0}', space=sflag, size = 0x8, scoped, tag = 'scoped memory for tpu_custom_call.1']
    %13 = vsyncpa [#allocation3], 0
    %s14 = scalar_lea.sflag [#allocation3], 1
    %15 = vsyncpa %s14, 0
    %16 = vsyncpa [#allocation6], 0
    %17 = vsyncpa [#allocation4], 0
    %s18 = scalar_lea.sflag [#allocation4], 1
    %19 = vsyncpa %s18, 0
    %20 = vsyncpa [#allocation10], 0
    %s21 = scalar_lea.sflag [#allocation10], 1
    %22 = vsyncpa %s21, 0
    loop: start=0, step=1, limit=4
    $region2: #{tpu_custom_call.1} parent=1 // loop_pre_header
      _
    $region3: #{tpu_custom_call.1} parent=1 // loop_header
      %s24 = sphi 0, %s28
      %p25 = scmp.ge.s32.totalorder %s24, 4
      %s34 = sphi 0, %s36
      %s37 = sphi 0, %s34
      %s38 = sphi 0, %s37
      %s54 = sphi 0, %s38
      %s60 = sphi 0, %s62
      %s63 = sphi 0, %s60
      %s64 = sphi 0, %s63
      %s80 = sphi 0, %s64
      %s86 = sphi 0, %s88
      %s89 = sphi 0, %s86
      %s90 = sphi 0, %s89
      %s106 = sphi 0, %s90
      %s110 = sphi 0, %s110
      %s112 = sphi 0, %s110
      %s113 = sphi 0, %s112
      %s127 = sphi 0, %s113
      %s131 = sphi 0, %s131
      %s133 = sphi 0, %s131
      %s134 = sphi 0, %s133
      %s148 = sphi 0, %s134
      %s152 = sphi 0, %s152
      %s154 = sphi 0, %s152
      %s155 = sphi 0, %s154
      %s169 = sphi 0, %s155
      %s175 = sphi 0, %s177
      %s178 = sphi 0, %s175
      %s179 = sphi 0, %s178
      %s195 = sphi 0, %s179
      %s201 = sphi 0, %s203
      %s204 = sphi 0, %s201
      %s205 = sphi 0, %s204
      %s221 = sphi 0, %s205
    $region4: #{tpu_custom_call.1} parent=1 // loop_header_branch
      %27 = sbr.rel (%p25) target = $region8
    $region5: #{tpu_custom_call.1} parent=1 // loop_body
      %s29 = ssub.s32 %s24, 1
      %s30 = ssub.s32 %s24, 2
      %s31 = sadd.s32 %s24, 1
      %s32 = ssub.s32 %s24, %s31
      %p33 = scmp.eq.s32.totalorder %s32, 0
      %s35 = sadd.s32 %s34, 1
      %s36 = scalar_select %p33, %s34, %s35
      %p39 = pneg %p33
      %p40 = scmp.eq.s32.totalorder %s24, 1
      %p41 = por %p39, %p40
      %p42 = scmp.ne.s32.totalorder %s34, %s37
      %p43 = scmp.eq.s32.totalorder %s24, 0
      %p44 = por %p42, %p43
      %p45 = scmp.ne.s32.totalorder %s34, %s37
      %p46 = scmp.eq.s32.totalorder %s29, 1
      %p47 = por %p45, %p46
      %p48 = scmp.ne.s32.totalorder %s37, %s38
      %p49 = scmp.eq.s32.totalorder %s29, 0
      %p50 = por %p48, %p49
      %p51 = scmp.ne.s32.totalorder %s37, %s38
      %p52 = scmp.eq.s32.totalorder %s30, 1
      %p53 = por %p51, %p52
      %p55 = scmp.ne.s32.totalorder %s38, %s54
      %p56 = scmp.eq.s32.totalorder %s30, 0
      %p57 = por %p55, %p56
      %s58 = ssub.s32 %s24, %s31
      %p59 = scmp.eq.s32.totalorder %s58, 0
      %s61 = sadd.s32 %s60, 1
      %s62 = scalar_select %p59, %s60, %s61
      %p65 = pneg %p59
      %p66 = scmp.eq.s32.totalorder %s24, 1
      %p67 = por %p65, %p66
      %p68 = scmp.ne.s32.totalorder %s60, %s63
      %p69 = scmp.eq.s32.totalorder %s24, 0
      %p70 = por %p68, %p69
      %p71 = scmp.ne.s32.totalorder %s60, %s63
      %p72 = scmp.eq.s32.totalorder %s29, 1
      %p73 = por %p71, %p72
      %p74 = scmp.ne.s32.totalorder %s63, %s64
      %p75 = scmp.eq.s32.totalorder %s29, 0
      %p76 = por %p74, %p75
      %p77 = scmp.ne.s32.totalorder %s63, %s64
      %p78 = scmp.eq.s32.totalorder %s30, 1
      %p79 = por %p77, %p78
      %p81 = scmp.ne.s32.totalorder %s64, %s80
      %p82 = scmp.eq.s32.totalorder %s30, 0
      %p83 = por %p81, %p82
      %s84 = ssub.s32 %s24, %s31
      %p85 = scmp.eq.s32.totalorder %s84, 0
      %s87 = sadd.s32 %s86, 1
      %s88 = scalar_select %p85, %s86, %s87
      %p91 = pneg %p85
      %p92 = scmp.eq.s32.totalorder %s24, 1
      %p93 = por %p91, %p92
      %p94 = scmp.ne.s32.totalorder %s86, %s89
      %p95 = scmp.eq.s32.totalorder %s24, 0
      %p96 = por %p94, %p95
      %p97 = scmp.ne.s32.totalorder %s86, %s89
      %p98 = scmp.eq.s32.totalorder %s29, 1
      %p99 = por %p97, %p98
      %p100 = scmp.ne.s32.totalorder %s89, %s90
      %p101 = scmp.eq.s32.totalorder %s29, 0
      %p102 = por %p100, %p101
      %p103 = scmp.ne.s32.totalorder %s89, %s90
      %p104 = scmp.eq.s32.totalorder %s30, 1
      %p105 = por %p103, %p104
      %p107 = scmp.ne.s32.totalorder %s90, %s106
      %p108 = scmp.eq.s32.totalorder %s30, 0
      %p109 = por %p107, %p108
      %s111 = sadd.s32 %s110, 1
      %p114 = scmp.eq.s32.totalorder %s24, 1
      %p115 = scmp.ne.s32.totalorder %s110, %s112
      %p116 = scmp.eq.s32.totalorder %s24, 0
      %p117 = por %p115, %p116
      %p118 = scmp.ne.s32.totalorder %s110, %s112
      %p119 = scmp.eq.s32.totalorder %s29, 1
      %p120 = por %p118, %p119
      %p121 = scmp.ne.s32.totalorder %s112, %s113
      %p122 = scmp.eq.s32.totalorder %s29, 0
      %p123 = por %p121, %p122
      %p124 = scmp.ne.s32.totalorder %s112, %s113
      %p125 = scmp.eq.s32.totalorder %s30, 1
      %p126 = por %p124, %p125
      %p128 = scmp.ne.s32.totalorder %s113, %s127
      %p129 = scmp.eq.s32.totalorder %s30, 0
      %p130 = por %p128, %p129
      %s132 = sadd.s32 %s131, 1
      %p135 = scmp.eq.s32.totalorder %s24, 1
      %p136 = scmp.ne.s32.totalorder %s131, %s133
      %p137 = scmp.eq.s32.totalorder %s24, 0
      %p138 = por %p136, %p137
      %p139 = scmp.ne.s32.totalorder %s131, %s133
      %p140 = scmp.eq.s32.totalorder %s29, 1
      %p141 = por %p139, %p140
      %p142 = scmp.ne.s32.totalorder %s133, %s134
      %p143 = scmp.eq.s32.totalorder %s29, 0
      %p144 = por %p142, %p143
      %p145 = scmp.ne.s32.totalorder %s133, %s134
      %p146 = scmp.eq.s32.totalorder %s30, 1
      %p147 = por %p145, %p146
      %p149 = scmp.ne.s32.totalorder %s134, %s148
      %p150 = scmp.eq.s32.totalorder %s30, 0
      %p151 = por %p149, %p150
      %s153 = sadd.s32 %s152, 1
      %p156 = scmp.eq.s32.totalorder %s24, 1
      %p157 = scmp.ne.s32.totalorder %s152, %s154
      %p158 = scmp.eq.s32.totalorder %s24, 0
      %p159 = por %p157, %p158
      %p160 = scmp.ne.s32.totalorder %s152, %s154
      %p161 = scmp.eq.s32.totalorder %s29, 1
      %p162 = por %p160, %p161
      %p163 = scmp.ne.s32.totalorder %s154, %s155
      %p164 = scmp.eq.s32.totalorder %s29, 0
      %p165 = por %p163, %p164
      %p166 = scmp.ne.s32.totalorder %s154, %s155
      %p167 = scmp.eq.s32.totalorder %s30, 1
      %p168 = por %p166, %p167
      %p170 = scmp.ne.s32.totalorder %s155, %s169
      %p171 = scmp.eq.s32.totalorder %s30, 0
      %p172 = por %p170, %p171
      %s173 = ssub.s32 %s24, %s31
      %p174 = scmp.eq.s32.totalorder %s173, 0
      %s176 = sadd.s32 %s175, 1
      %s177 = scalar_select %p174, %s175, %s176
      %p180 = pneg %p174
      %p181 = scmp.eq.s32.totalorder %s24, 1
      %p182 = por %p180, %p181
      %p183 = scmp.ne.s32.totalorder %s175, %s178
      %p184 = scmp.eq.s32.totalorder %s24, 0
      %p185 = por %p183, %p184
      %p186 = scmp.ne.s32.totalorder %s175, %s178
      %p187 = scmp.eq.s32.totalorder %s29, 1
      %p188 = por %p186, %p187
      %p189 = scmp.ne.s32.totalorder %s178, %s179
      %p190 = scmp.eq.s32.totalorder %s29, 0
      %p191 = por %p189, %p190
      %p192 = scmp.ne.s32.totalorder %s178, %s179
      %p193 = scmp.eq.s32.totalorder %s30, 1
      %p194 = por %p192, %p193
      %p196 = scmp.ne.s32.totalorder %s179, %s195
      %p197 = scmp.eq.s32.totalorder %s30, 0
      %p198 = por %p196, %p197
      %s199 = ssub.s32 %s24, %s31
      %p200 = scmp.eq.s32.totalorder %s199, 0
      %s202 = sadd.s32 %s201, 1
      %s203 = scalar_select %p200, %s201, %s202
      %p206 = pneg %p200
      %p207 = scmp.eq.s32.totalorder %s24, 1
      %p208 = por %p206, %p207
      %p209 = scmp.ne.s32.totalorder %s201, %s204
      %p210 = scmp.eq.s32.totalorder %s24, 0
      %p211 = por %p209, %p210
      %p212 = scmp.ne.s32.totalorder %s201, %s204
      %p213 = scmp.eq.s32.totalorder %s29, 1
      %p214 = por %p212, %p213
      %p215 = scmp.ne.s32.totalorder %s204, %s205
      %p216 = scmp.eq.s32.totalorder %s29, 0
      %p217 = por %p215, %p216
      %p218 = scmp.ne.s32.totalorder %s204, %s205
      %p219 = scmp.eq.s32.totalorder %s30, 1
      %p220 = por %p218, %p219
      %p222 = scmp.ne.s32.totalorder %s205, %s221
      %p223 = scmp.eq.s32.totalorder %s30, 0
      %p224 = por %p222, %p223
      %p225 = scmp.le.s32.totalorder 1, %s24
      %p226 = scmp.lt.s32.totalorder %s24, 3
      %p227 = pnand %p225, %p226
      %p228 = pneg %p227
      // Predicated region
      $region9: #{tpu_custom_call.1} parent=5 // pred_check
        _
      $region10: #{tpu_custom_call.1} parent=5 // pred_check_branch
        %230 = sbr.rel (%p227) target = $region12
      $region11: #{tpu_custom_call.1} parent=5 // pred_region
        %s231 = ssub.s32 %s24, 1
        // Predicated region
        $region13: #{tpu_custom_call.1} parent=11 // pred_check
          %p232 = pneg %p123
        $region14: #{tpu_custom_call.1} parent=11 // pred_check_branch
          %234 = sbr.rel (%p232) target = $region16
        $region15: #{tpu_custom_call.1} parent=11 // pred_region
          %s236 = ssub.s32 4096, 4096
          %237 = vsyncadd [#allocation6], %s236
          %s238 = sshll.u32 [#allocation5], 4
          %s239 = int_to_ptr.vmem [resolvable:$true] %s238
          %244 = dma.hbm_to_vmem [thread:$0]  %s3, 4096, %s239, [#allocation6], 256, 256, 16
        $region16: #{tpu_custom_call.1} parent=11 // pred_fallthru
          _
        // Predicated region
        $region17: #{tpu_custom_call.1} parent=11 // pred_check
          %p245 = pneg %p144
        $region18: #{tpu_custom_call.1} parent=11 // pred_check_branch
          %247 = sbr.rel (%p245) target = $region20
        $region19: #{tpu_custom_call.1} parent=11 // pred_region
          %s249 = ssub.s32 4096, 4096
          %250 = vsyncadd [#allocation6], %s249
          %s251 = sshll.u32 [#allocation7], 4
          %s252 = int_to_ptr.vmem [resolvable:$true] %s251
          %257 = dma.hbm_to_vmem [thread:$0]  %s4, 4096, %s252, [#allocation6], 256, 256, 16
        $region20: #{tpu_custom_call.1} parent=11 // pred_fallthru
          _
        // Predicated region
        $region21: #{tpu_custom_call.1} parent=11 // pred_check
          %p258 = pneg %p165
        $region22: #{tpu_custom_call.1} parent=11 // pred_check_branch
          %260 = sbr.rel (%p258) target = $region24
        $region23: #{tpu_custom_call.1} parent=11 // pred_region
          _
        $region24: #{tpu_custom_call.1} parent=11 // pred_fallthru
          _
      $region12: #{tpu_custom_call.1} parent=5 // pred_fallthru
        _
      %p261 = scmp.lt.s32.totalorder %s24, 2
      // Predicated region
      $region25: #{tpu_custom_call.1} parent=5 // pred_check
        %p262 = pneg %p261
      $region26: #{tpu_custom_call.1} parent=5 // pred_check_branch
        %264 = sbr.rel (%p262) target = $region28
      $region27: #{tpu_custom_call.1} parent=5 // pred_region
        // Predicated region
        $region29: #{tpu_custom_call.1} parent=27 // pred_check
          %p265 = pneg %p44
        $region30: #{tpu_custom_call.1} parent=27 // pred_check_branch
          %267 = sbr.rel (%p265) target = $region32
        $region31: #{tpu_custom_call.1} parent=27 // pred_region
          %s268 = sand.u32 %s34, 1
          %s269 = scalar_lea.sflag [#allocation3], %s268
          %s270 = sand.u32 %s34, 1
          %s271 = smul.addr %s270, 8
          %s272 = scalar_lea.vmem [#allocation2], %s271
          %s273 = smul.u32 2, %s24
          %s275 = ssub.s32 128, 128
          %276 = vsyncadd %s269, %s275
          %s277 = smul.addr %s273, 64
          %s278 = scalar_lea.hbm %s0, %s277
          %s279 = sshll.u32 %s272, 4
          %s280 = int_to_ptr.vmem [resolvable:$true] %s279
          %285 = dma.hbm_to_vmem [thread:$0]  %s278, 128, %s280, %s269, 64, 64, 4
        $region32: #{tpu_custom_call.1} parent=27 // pred_fallthru
          _
        // Predicated region
        $region33: #{tpu_custom_call.1} parent=27 // pred_check
          %p286 = pneg %p70
        $region34: #{tpu_custom_call.1} parent=27 // pred_check_branch
          %288 = sbr.rel (%p286) target = $region36
        $region35: #{tpu_custom_call.1} parent=27 // pred_region
          %p289 = scmp.lt.s32.totalorder %s24, 1
          %s290 = scalar_select %p289, %s24, 1
          %s291 = scalar_lea.vmem %s1, %s290
        $region36: #{tpu_custom_call.1} parent=27 // pred_fallthru
          _
        // Predicated region
        $region37: #{tpu_custom_call.1} parent=27 // pred_check
          %p292 = pneg %p96
        $region38: #{tpu_custom_call.1} parent=27 // pred_check_branch
          %294 = sbr.rel (%p292) target = $region40
        $region39: #{tpu_custom_call.1} parent=27 // pred_region
          %p295 = scmp.lt.s32.totalorder %s24, 1
          %s296 = scalar_select %p295, %s24, 1
          %s297 = scalar_lea.vmem %s2, %s296
        $region40: #{tpu_custom_call.1} parent=27 // pred_fallthru
          _
      $region28: #{tpu_custom_call.1} parent=5 // pred_fallthru
        _
      %p298 = scmp.le.s32.totalorder 1, %s24
      %p299 = scmp.lt.s32.totalorder %s24, 3
      %p300 = pnand %p298, %p299
      %p301 = pneg %p300
      // Predicated region
      $region41: #{tpu_custom_call.1} parent=5 // pred_check
        _
      $region42: #{tpu_custom_call.1} parent=5 // pred_check_branch
        %303 = sbr.rel (%p300) target = $region44
      $region43: #{tpu_custom_call.1} parent=5 // pred_region
        %s304 = ssub.s32 %s24, 1
        %s305 = sand.u32 %s37, 1
        %s306 = scalar_lea.sflag [#allocation3], %s305
        %s307 = sand.u32 %s37, 1
        %s308 = smul.addr %s307, 8
        %s309 = scalar_lea.vmem [#allocation2], %s308
        // Predicated region
        $region45: #{tpu_custom_call.1} parent=43 // pred_check
          %p310 = pneg %p50
        $region46: #{tpu_custom_call.1} parent=43 // pred_check_branch
          %312 = sbr.rel (%p310) target = $region48
        $region47: #{tpu_custom_call.1} parent=43 // pred_region
          %313 = dma.done %s306, 128
        $region48: #{tpu_custom_call.1} parent=43 // pred_fallthru
          _
        // Predicated region
        $region49: #{tpu_custom_call.1} parent=43 // pred_check
          %p314 = pneg %p123
        $region50: #{tpu_custom_call.1} parent=43 // pred_check_branch
          %316 = sbr.rel (%p314) target = $region52
        $region51: #{tpu_custom_call.1} parent=43 // pred_region
          %317 = dma.done [#allocation6], 4096
        $region52: #{tpu_custom_call.1} parent=43 // pred_fallthru
          _
        // Predicated region
        $region53: #{tpu_custom_call.1} parent=43 // pred_check
          %p318 = pneg %p144
        $region54: #{tpu_custom_call.1} parent=43 // pred_check_branch
          %320 = sbr.rel (%p318) target = $region56
        $region55: #{tpu_custom_call.1} parent=43 // pred_region
          %321 = dma.done [#allocation6], 4096
        $region56: #{tpu_custom_call.1} parent=43 // pred_fallthru
          _
        %s322 = sand.u32 %s37, 1
        %s323 = scalar_lea.sflag [#allocation3], %s322
        %s324 = sand.u32 %s37, 1
        %s325 = smul.addr %s324, 8
        %s326 = scalar_lea.vmem [#allocation2], %s325
        %p327 = pneg %p50
        %p328 = pneg %p47
        %p329 = scmp.lt.s32.totalorder %s29, 1
        %s330 = scalar_select %p329, %s29, 1
        %s331 = scalar_lea.vmem %s1, %s330
        %p332 = pneg %p76
        %p333 = pneg %p73
        %p334 = scmp.lt.s32.totalorder %s29, 1
        %s335 = scalar_select %p334, %s29, 1
        %s336 = scalar_lea.vmem %s2, %s335
        %p337 = pneg %p102
        %p338 = pneg %p99
        %p339 = pneg %p123
        %p340 = pneg %p120
        %p341 = pneg %p144
        %p342 = pneg %p141
        %p343 = pneg %p165
        %p344 = pneg %p162
        %p345 = pneg %p191
        %p346 = pneg %p188
        %s347 = sand.u32 %s178, 1
        %s348 = scalar_lea.sflag [#allocation4], %s347
        %s349 = sand.u32 %s178, 1
        %s350 = smul.addr %s349, 8
        %s351 = scalar_lea.vmem [#allocation8], %s350
        %p352 = pneg %p217
        %p353 = pneg %p214
        %s354 = sand.u32 %s204, 1
        %s355 = scalar_lea.sflag [#allocation10], %s354
        %s356 = sand.u32 %s204, 1
        %s357 = smul.addr %s356, 8
        %s358 = scalar_lea.vmem [#allocation9], %s357
        %s359 = smul.u32 2, %s29
        %p360 = scmp.lt.s32.totalorder %s29, 1
        %s361 = scalar_select %p360, %s29, 1
        %s362 = scalar_lea.vmem %s1, %s361
        %p363 = scmp.lt.s32.totalorder %s29, 1
        %s364 = scalar_select %p363, %s29, 1
        %s365 = scalar_lea.vmem %s2, %s364
        %v367 = vld [vmem:[%s309] sm:$0xf]
        %v368 = vld [vmem:[%s309 + $0x4] sm:$0xf]
        %v369 = vld [vmem:[#allocation5] sm:$0xff]
        %v370 = vld [vmem:[#allocation5 + $0x8] sm:$0xff]
        %v371 = vld [vmem:[#allocation5 + $0x10] sm:$0xff]
        %v372 = vld [vmem:[#allocation5 + $0x18] sm:$0xff]
        %v373 = vld [vmem:[#allocation5 + $0x20] sm:$0xff]
        %v374 = vld [vmem:[#allocation5 + $0x28] sm:$0xff]
        %v375 = vld [vmem:[#allocation5 + $0x30] sm:$0xff]
        %v376 = vld [vmem:[#allocation5 + $0x38] sm:$0xff]
        %v377 = vld [vmem:[#allocation5 + $0x40] sm:$0xff]
        %v378 = vld [vmem:[#allocation5 + $0x48] sm:$0xff]
        %v379 = vld [vmem:[#allocation5 + $0x50] sm:$0xff]
        %v380 = vld [vmem:[#allocation5 + $0x58] sm:$0xff]
        %v381 = vld [vmem:[#allocation5 + $0x60] sm:$0xff]
        %v382 = vld [vmem:[#allocation5 + $0x68] sm:$0xff]
        %v383 = vld [vmem:[#allocation5 + $0x70] sm:$0xff]
        %v384 = vld [vmem:[#allocation5 + $0x78] sm:$0xff]
        %v385 = vld [vmem:[#allocation5 + $0x80] sm:$0xff]
        %v386 = vld [vmem:[#allocation5 + $0x88] sm:$0xff]
        %v387 = vld [vmem:[#allocation5 + $0x90] sm:$0xff]
        %v388 = vld [vmem:[#allocation5 + $0x98] sm:$0xff]
        %v389 = vld [vmem:[#allocation5 + $0xa0] sm:$0xff]
        %v390 = vld [vmem:[#allocation5 + $0xa8] sm:$0xff]
        %v391 = vld [vmem:[#allocation5 + $0xb0] sm:$0xff]
        %v392 = vld [vmem:[#allocation5 + $0xb8] sm:$0xff]
        %v393 = vld [vmem:[#allocation5 + $0xc0] sm:$0xff]
        %v394 = vld [vmem:[#allocation5 + $0xc8] sm:$0xff]
        %v395 = vld [vmem:[#allocation5 + $0xd0] sm:$0xff]
        %v396 = vld [vmem:[#allocation5 + $0xd8] sm:$0xff]
        %v397 = vld [vmem:[#allocation5 + $0xe0] sm:$0xff]
        %v398 = vld [vmem:[#allocation5 + $0xe8] sm:$0xff]
        %v399 = vld [vmem:[#allocation5 + $0xf0] sm:$0xff]
        %v400 = vld [vmem:[#allocation5 + $0xf8] sm:$0xff]
        %v403 = vunpack.c.l.b16 %v367
        %v404 = vunpack.c.l.b16 %v368
        %v405 = vpack.c.b16 %v404, %v403
        %v439 = vunpack.c.l.b16 %v369
        %v440 = vunpack.c.h.b16 %v369
        %v441 = vunpack.c.l.b16 %v370
        %v442 = vunpack.c.h.b16 %v370
        %v443 = vunpack.c.l.b16 %v371
        %v444 = vunpack.c.h.b16 %v371
        %v445 = vunpack.c.l.b16 %v372
        %v446 = vunpack.c.h.b16 %v372
        %v447 = vunpack.c.l.b16 %v373
        %v448 = vunpack.c.h.b16 %v373
        %v449 = vunpack.c.l.b16 %v374
        %v450 = vunpack.c.h.b16 %v374
        %v451 = vunpack.c.l.b16 %v375
        %v452 = vunpack.c.h.b16 %v375
        %v453 = vunpack.c.l.b16 %v376
        %v454 = vunpack.c.h.b16 %v376
        %v455 = vunpack.c.l.b16 %v377
        %v456 = vunpack.c.h.b16 %v377
        %v457 = vunpack.c.l.b16 %v378
        %v458 = vunpack.c.h.b16 %v378
        %v459 = vunpack.c.l.b16 %v379
        %v460 = vunpack.c.h.b16 %v379
        %v461 = vunpack.c.l.b16 %v380
        %v462 = vunpack.c.h.b16 %v380
        %v463 = vunpack.c.l.b16 %v381
        %v464 = vunpack.c.h.b16 %v381
        %v465 = vunpack.c.l.b16 %v382
        %v466 = vunpack.c.h.b16 %v382
        %v467 = vunpack.c.l.b16 %v383
        %v468 = vunpack.c.h.b16 %v383
        %v469 = vunpack.c.l.b16 %v384
        %v470 = vunpack.c.h.b16 %v384
        %v471 = vunpack.c.l.b16 %v385
        %v472 = vunpack.c.h.b16 %v385
        %v473 = vunpack.c.l.b16 %v386
        %v474 = vunpack.c.h.b16 %v386
        %v475 = vunpack.c.l.b16 %v387
        %v476 = vunpack.c.h.b16 %v387
        %v477 = vunpack.c.l.b16 %v388
        %v478 = vunpack.c.h.b16 %v388
        %v479 = vunpack.c.l.b16 %v389
        %v480 = vunpack.c.h.b16 %v389
        %v481 = vunpack.c.l.b16 %v390
        %v482 = vunpack.c.h.b16 %v390
        %v483 = vunpack.c.l.b16 %v391
        %v484 = vunpack.c.h.b16 %v391
        %v485 = vunpack.c.l.b16 %v392
        %v486 = vunpack.c.h.b16 %v392
        %v487 = vunpack.c.l.b16 %v393
        %v488 = vunpack.c.h.b16 %v393
        %v489 = vunpack.c.l.b16 %v394
        %v490 = vunpack.c.h.b16 %v394
        %v491 = vunpack.c.l.b16 %v395
        %v492 = vunpack.c.h.b16 %v395
        %v493 = vunpack.c.l.b16 %v396
        %v494 = vunpack.c.h.b16 %v396
        %v495 = vunpack.c.l.b16 %v397
        %v496 = vunpack.c.h.b16 %v397
        %v497 = vunpack.c.l.b16 %v398
        %v498 = vunpack.c.h.b16 %v398
        %v499 = vunpack.c.l.b16 %v399
        %v500 = vunpack.c.h.b16 %v399
        %v501 = vunpack.c.l.b16 %v400
        %v502 = vunpack.c.h.b16 %v400
        %v503 = vpack.c.b16 %v443, %v439
        %v504 = vpack.c.b16 %v444, %v440
        %v505 = vpack.c.b16 %v445, %v441
        %v506 = vpack.c.b16 %v446, %v442
        %v507 = vpack.c.b16 %v451, %v447
        %v508 = vpack.c.b16 %v452, %v448
        %v509 = vpack.c.b16 %v453, %v449
        %v510 = vpack.c.b16 %v454, %v450
        %v511 = vpack.c.b16 %v459, %v455
        %v512 = vpack.c.b16 %v460, %v456
        %v513 = vpack.c.b16 %v461, %v457
        %v514 = vpack.c.b16 %v462, %v458
        %v515 = vpack.c.b16 %v467, %v463
        %v516 = vpack.c.b16 %v468, %v464
        %v517 = vpack.c.b16 %v469, %v465
        %v518 = vpack.c.b16 %v470, %v466
        %v519 = vpack.c.b16 %v475, %v471
        %v520 = vpack.c.b16 %v476, %v472
        %v521 = vpack.c.b16 %v477, %v473
        %v522 = vpack.c.b16 %v478, %v474
        %v523 = vpack.c.b16 %v483, %v479
        %v524 = vpack.c.b16 %v484, %v480
        %v525 = vpack.c.b16 %v485, %v481
        %v526 = vpack.c.b16 %v486, %v482
        %v527 = vpack.c.b16 %v491, %v487
        %v528 = vpack.c.b16 %v492, %v488
        %v529 = vpack.c.b16 %v493, %v489
        %v530 = vpack.c.b16 %v494, %v490
        %v531 = vpack.c.b16 %v499, %v495
        %v532 = vpack.c.b16 %v500, %v496
        %v533 = vpack.c.b16 %v501, %v497
        %v534 = vpack.c.b16 %v502, %v498
        %567 = vmatprep.subr.bf16.mxu0 %v532
        %568 = vmatpush1.bf16.msra.mxu0 %v531
        %569 = vmatprep.subr.bf16.mxu0 %v528
        %570 = vmatpush1.bf16.msra.mxu0 %v527
        %571 = vmatprep.subr.bf16.mxu0 %v524
        %572 = vmatpush1.bf16.msra.mxu0 %v523
        %573 = vmatprep.subr.bf16.mxu0 %v520
        %574 = vmatpush1.bf16.msra.mxu0 %v519
        %575 = vmatprep.subr.bf16.mxu0 %v516
        %576 = vmatpush1.bf16.msra.mxu0 %v515
        %577 = vmatprep.subr.bf16.mxu0 %v512
        %578 = vmatpush1.bf16.msra.mxu0 %v511
        %579 = vmatprep.subr.bf16.mxu0 %v508
        %580 = vmatpush1.bf16.msra.mxu0 %v507
        %581 = vmatprep.subr.bf16.mxu0 %v504
        %582 = vmatpush1.bf16.msra.mxu0 %v503
        %583 = vmatprep.subr.bf16.mxu0 0
        %584 = vmatpush2.bf16.msra.mxu0 0
        %585 = vmatprep.subr.bf16.mxu0 0
        %586 = vmatpush2.bf16.msra.mxu0 0
        %587 = vmatprep.subr.bf16.mxu0 0
        %588 = vmatpush2.bf16.msra.mxu0 0
        %589 = vmatprep.subr.bf16.mxu0 0
        %590 = vmatpush2.bf16.msra.mxu0 0
        %591 = vmatprep.subr.bf16.mxu0 0
        %592 = vmatpush2.bf16.msra.mxu0 0
        %593 = vmatprep.subr.bf16.mxu0 0
        %594 = vmatpush2.bf16.msra.mxu0 0
        %595 = vmatprep.subr.bf16.mxu0 0
        %596 = vmatpush2.bf16.msra.mxu0 0
        %597 = vmatprep.subr.bf16.mxu0 0
        %598 = vmatpush2.bf16.msra.mxu0 0
        %599 = vmatprep.mubr.bf16.mxu0 0
        %600 = vmatmul.mubr.bf16.gmra.mxu0 %v405
        %v601 = vpop.f32.mrf.mxu0
        %v602 = vadd.f32 0.0, %v601
        %v603 = vpop.f32.mrf.mxu0
        %v604 = vadd.f32 0.0, %v603
        %v605 = vpop.f32.mrf.mxu0
        %v606 = vadd.f32 0.0, %v605
        %v607 = vpop.f32.mrf.mxu0
        %v608 = vadd.f32 0.0, %v607
        %609 = vdwg.mxu0
        %610 = vmatprep.subr.bf16.mxu0 %v534
        %611 = vmatpush1.bf16.msra.mxu0 %v533
        %612 = vmatprep.subr.bf16.mxu0 %v530
        %613 = vmatpush1.bf16.msra.mxu0 %v529
        %614 = vmatprep.subr.bf16.mxu0 %v526
        %615 = vmatpush1.bf16.msra.mxu0 %v525
        %616 = vmatprep.subr.bf16.mxu0 %v522
        %617 = vmatpush1.bf16.msra.mxu0 %v521
        %618 = vmatprep.subr.bf16.mxu0 %v518
        %619 = vmatpush1.bf16.msra.mxu0 %v517
        %620 = vmatprep.subr.bf16.mxu0 %v514
        %621 = vmatpush1.bf16.msra.mxu0 %v513
        %622 = vmatprep.subr.bf16.mxu0 %v510
        %623 = vmatpush1.bf16.msra.mxu0 %v509
        %624 = vmatprep.subr.bf16.mxu0 %v506
        %625 = vmatpush1.bf16.msra.mxu0 %v505
        %626 = vmatprep.subr.bf16.mxu0 0
        %627 = vmatpush2.bf16.msra.mxu0 0
        %628 = vmatprep.subr.bf16.mxu0 0
        %629 = vmatpush2.bf16.msra.mxu0 0
        %630 = vmatprep.subr.bf16.mxu0 0
        %631 = vmatpush2.bf16.msra.mxu0 0
        %632 = vmatprep.subr.bf16.mxu0 0
        %633 = vmatpush2.bf16.msra.mxu0 0
        %634 = vmatprep.subr.bf16.mxu0 0
        %635 = vmatpush2.bf16.msra.mxu0 0
        %636 = vmatprep.subr.bf16.mxu0 0
        %637 = vmatpush2.bf16.msra.mxu0 0
        %638 = vmatprep.subr.bf16.mxu0 0
        %639 = vmatpush2.bf16.msra.mxu0 0
        %640 = vmatprep.subr.bf16.mxu0 0
        %641 = vmatpush2.bf16.msra.mxu0 0
        %642 = vmatprep.mubr.bf16.mxu0 0
        %643 = vmatmul.mubr.bf16.gmra.mxu0 %v405
        %v644 = vpop.f32.mrf.mxu0
        %v645 = vadd.f32 0.0, %v644
        %v646 = vpop.f32.mrf.mxu0
        %v647 = vadd.f32 0.0, %v646
        %v648 = vpop.f32.mrf.mxu0
        %v649 = vadd.f32 0.0, %v648
        %v650 = vpop.f32.mrf.mxu0
        %v651 = vadd.f32 0.0, %v650
        %652 = vdwg.mxu0
        %v653 = vld [vmem:[%s362] sm:$0x1]
        %v654 = vld [vmem:[#allocation7] sm:$0xff]
        %v655 = vld [vmem:[#allocation7 + $0x8] sm:$0xff]
        %v656 = vld [vmem:[#allocation7 + $0x10] sm:$0xff]
        %v657 = vld [vmem:[#allocation7 + $0x18] sm:$0xff]
        %v658 = vld [vmem:[#allocation7 + $0x20] sm:$0xff]
        %v659 = vld [vmem:[#allocation7 + $0x28] sm:$0xff]
        %v660 = vld [vmem:[#allocation7 + $0x30] sm:$0xff]
        %v661 = vld [vmem:[#allocation7 + $0x38] sm:$0xff]
        %v662 = vld [vmem:[#allocation7 + $0x40] sm:$0xff]
        %v663 = vld [vmem:[#allocation7 + $0x48] sm:$0xff]
        %v664 = vld [vmem:[#allocation7 + $0x50] sm:$0xff]
        %v665 = vld [vmem:[#allocation7 + $0x58] sm:$0xff]
        %v666 = vld [vmem:[#allocation7 + $0x60] sm:$0xff]
        %v667 = vld [vmem:[#allocation7 + $0x68] sm:$0xff]
        %v668 = vld [vmem:[#allocation7 + $0x70] sm:$0xff]
        %v669 = vld [vmem:[#allocation7 + $0x78] sm:$0xff]
        %v670 = vld [vmem:[#allocation7 + $0x80] sm:$0xff]
        %v671 = vld [vmem:[#allocation7 + $0x88] sm:$0xff]
        %v672 = vld [vmem:[#allocation7 + $0x90] sm:$0xff]
        %v673 = vld [vmem:[#allocation7 + $0x98] sm:$0xff]
        %v674 = vld [vmem:[#allocation7 + $0xa0] sm:$0xff]
        %v675 = vld [vmem:[#allocation7 + $0xa8] sm:$0xff]
        %v676 = vld [vmem:[#allocation7 + $0xb0] sm:$0xff]
        %v677 = vld [vmem:[#allocation7 + $0xb8] sm:$0xff]
        %v678 = vld [vmem:[#allocation7 + $0xc0] sm:$0xff]
        %v679 = vld [vmem:[#allocation7 + $0xc8] sm:$0xff]
        %v680 = vld [vmem:[#allocation7 + $0xd0] sm:$0xff]
        %v681 = vld [vmem:[#allocation7 + $0xd8] sm:$0xff]
        %v682 = vld [vmem:[#allocation7 + $0xe0] sm:$0xff]
        %v683 = vld [vmem:[#allocation7 + $0xe8] sm:$0xff]
        %v684 = vld [vmem:[#allocation7 + $0xf0] sm:$0xff]
        %v685 = vld [vmem:[#allocation7 + $0xf8] sm:$0xff]
        %v686 = vld [vmem:[%s5] sm:$0xf]
        %v719 = vunpack.c.l.b16 %v654
        %v720 = vunpack.c.h.b16 %v654
        %v721 = vunpack.c.l.b16 %v655
        %v722 = vunpack.c.h.b16 %v655
        %v723 = vunpack.c.l.b16 %v656
        %v724 = vunpack.c.h.b16 %v656
        %v725 = vunpack.c.l.b16 %v657
        %v726 = vunpack.c.h.b16 %v657
        %v727 = vunpack.c.l.b16 %v658
        %v728 = vunpack.c.h.b16 %v658
        %v729 = vunpack.c.l.b16 %v659
        %v730 = vunpack.c.h.b16 %v659
        %v731 = vunpack.c.l.b16 %v660
        %v732 = vunpack.c.h.b16 %v660
        %v733 = vunpack.c.l.b16 %v661
        %v734 = vunpack.c.h.b16 %v661
        %v735 = vunpack.c.l.b16 %v662
        %v736 = vunpack.c.h.b16 %v662
        %v737 = vunpack.c.l.b16 %v663
        %v738 = vunpack.c.h.b16 %v663
        %v739 = vunpack.c.l.b16 %v664
        %v740 = vunpack.c.h.b16 %v664
        %v741 = vunpack.c.l.b16 %v665
        %v742 = vunpack.c.h.b16 %v665
        %v743 = vunpack.c.l.b16 %v666
        %v744 = vunpack.c.h.b16 %v666
        %v745 = vunpack.c.l.b16 %v667
        %v746 = vunpack.c.h.b16 %v667
        %v747 = vunpack.c.l.b16 %v668
        %v748 = vunpack.c.h.b16 %v668
        %v749 = vunpack.c.l.b16 %v669
        %v750 = vunpack.c.h.b16 %v669
        %v751 = vunpack.c.l.b16 %v670
        %v752 = vunpack.c.h.b16 %v670
        %v753 = vunpack.c.l.b16 %v671
        %v754 = vunpack.c.h.b16 %v671
        %v755 = vunpack.c.l.b16 %v672
        %v756 = vunpack.c.h.b16 %v672
        %v757 = vunpack.c.l.b16 %v673
        %v758 = vunpack.c.h.b16 %v673
        %v759 = vunpack.c.l.b16 %v674
        %v760 = vunpack.c.h.b16 %v674
        %v761 = vunpack.c.l.b16 %v675
        %v762 = vunpack.c.h.b16 %v675
        %v763 = vunpack.c.l.b16 %v676
        %v764 = vunpack.c.h.b16 %v676
        %v765 = vunpack.c.l.b16 %v677
        %v766 = vunpack.c.h.b16 %v677
        %v767 = vunpack.c.l.b16 %v678
        %v768 = vunpack.c.h.b16 %v678
        %v769 = vunpack.c.l.b16 %v679
        %v770 = vunpack.c.h.b16 %v679
        %v771 = vunpack.c.l.b16 %v680
        %v772 = vunpack.c.h.b16 %v680
        %v773 = vunpack.c.l.b16 %v681
        %v774 = vunpack.c.h.b16 %v681
        %v775 = vunpack.c.l.b16 %v682
        %v776 = vunpack.c.h.b16 %v682
        %v777 = vunpack.c.l.b16 %v683
        %v778 = vunpack.c.h.b16 %v683
        %v779 = vunpack.c.l.b16 %v684
        %v780 = vunpack.c.h.b16 %v684
        %v781 = vunpack.c.l.b16 %v685
        %v782 = vunpack.c.h.b16 %v685
        %v783 = vpack.c.b16 %v723, %v719
        %v784 = vpack.c.b16 %v724, %v720
        %v785 = vpack.c.b16 %v725, %v721
        %v786 = vpack.c.b16 %v726, %v722
        %v787 = vpack.c.b16 %v731, %v727
        %v788 = vpack.c.b16 %v732, %v728
        %v789 = vpack.c.b16 %v733, %v729
        %v790 = vpack.c.b16 %v734, %v730
        %v791 = vpack.c.b16 %v739, %v735
        %v792 = vpack.c.b16 %v740, %v736
        %v793 = vpack.c.b16 %v741, %v737
        %v794 = vpack.c.b16 %v742, %v738
        %v795 = vpack.c.b16 %v747, %v743
        %v796 = vpack.c.b16 %v748, %v744
        %v797 = vpack.c.b16 %v749, %v745
        %v798 = vpack.c.b16 %v750, %v746
        %v799 = vpack.c.b16 %v755, %v751
        %v800 = vpack.c.b16 %v756, %v752
        %v801 = vpack.c.b16 %v757, %v753
        %v802 = vpack.c.b16 %v758, %v754
        %v803 = vpack.c.b16 %v763, %v759
        %v804 = vpack.c.b16 %v764, %v760
        %v805 = vpack.c.b16 %v765, %v761
        %v806 = vpack.c.b16 %v766, %v762
        %v807 = vpack.c.b16 %v771, %v767
        %v808 = vpack.c.b16 %v772, %v768
        %v809 = vpack.c.b16 %v773, %v769
        %v810 = vpack.c.b16 %v774, %v770
        %v811 = vpack.c.b16 %v779, %v775
        %v812 = vpack.c.b16 %v780, %v776
        %v813 = vpack.c.b16 %v781, %v777
        %v814 = vpack.c.b16 %v782, %v778
        %v848 = vlaneseq
        %v849 = vshrl.u32 %v848, 7
        %v850 = vsub.s32 0, %v849
        %v851 = vrot.slane %v686, %v850
        %v852 = vlaneseq
        %v853 = vshrl.u32 %v852, 7
        %v854 = vsub.s32 1, %v853
        %v855 = vrot.slane %v686, %v854
        %v856 = vlaneseq
        %v857 = vshrl.u32 %v856, 7
        %v858 = vsub.s32 2, %v857
        %v859 = vrot.slane %v686, %v858
        %v860 = vlaneseq
        %v861 = vshrl.u32 %v860, 7
        %v862 = vsub.s32 3, %v861
        %v863 = vrot.slane %v686, %v862
        %868 = vmatprep.subr.bf16.mxu0 %v812
        %869 = vmatpush1.bf16.msra.mxu0 %v811
        %870 = vmatprep.subr.bf16.mxu0 %v808
        %871 = vmatpush1.bf16.msra.mxu0 %v807
        %872 = vmatprep.subr.bf16.mxu0 %v804
        %873 = vmatpush1.bf16.msra.mxu0 %v803
        %874 = vmatprep.subr.bf16.mxu0 %v800
        %875 = vmatpush1.bf16.msra.mxu0 %v799
        %876 = vmatprep.subr.bf16.mxu0 %v796
        %877 = vmatpush1.bf16.msra.mxu0 %v795
        %878 = vmatprep.subr.bf16.mxu0 %v792
        %879 = vmatpush1.bf16.msra.mxu0 %v791
        %880 = vmatprep.subr.bf16.mxu0 %v788
        %881 = vmatpush1.bf16.msra.mxu0 %v787
        %882 = vmatprep.subr.bf16.mxu0 %v784
        %883 = vmatpush1.bf16.msra.mxu0 %v783
        %884 = vmatprep.subr.bf16.mxu0 0
        %885 = vmatpush2.bf16.msra.mxu0 0
        %886 = vmatprep.subr.bf16.mxu0 0
        %887 = vmatpush2.bf16.msra.mxu0 0
        %888 = vmatprep.subr.bf16.mxu0 0
        %889 = vmatpush2.bf16.msra.mxu0 0
        %890 = vmatprep.subr.bf16.mxu0 0
        %891 = vmatpush2.bf16.msra.mxu0 0
        %892 = vmatprep.subr.bf16.mxu0 0
        %893 = vmatpush2.bf16.msra.mxu0 0
        %894 = vmatprep.subr.bf16.mxu0 0
        %895 = vmatpush2.bf16.msra.mxu0 0
        %896 = vmatprep.subr.bf16.mxu0 0
        %897 = vmatpush2.bf16.msra.mxu0 0
        %898 = vmatprep.subr.bf16.mxu0 0
        %899 = vmatpush2.bf16.msra.mxu0 0
        %900 = vmatprep.mubr.bf16.mxu0 0
        %901 = vmatmul.mubr.bf16.gmra.mxu0 %v653
        %v902 = vpop.f32.mrf.mxu0
        %v903 = vadd.f32 %v851, %v902
        %v904 = vpop.f32.mrf.mxu0
        %v905 = vadd.f32 %v855, %v904
        %v906 = vpop.f32.mrf.mxu0
        %v907 = vpop.f32.mrf.mxu0
        %908 = vdwg.mxu0
        %909 = vmatprep.subr.bf16.mxu0 %v814
        %910 = vmatpush1.bf16.msra.mxu0 %v813
        %911 = vmatprep.subr.bf16.mxu0 %v810
        %912 = vmatpush1.bf16.msra.mxu0 %v809
        %913 = vmatprep.subr.bf16.mxu0 %v806
        %914 = vmatpush1.bf16.msra.mxu0 %v805
        %915 = vmatprep.subr.bf16.mxu0 %v802
        %916 = vmatpush1.bf16.msra.mxu0 %v801
        %917 = vmatprep.subr.bf16.mxu0 %v798
        %918 = vmatpush1.bf16.msra.mxu0 %v797
        %919 = vmatprep.subr.bf16.mxu0 %v794
        %920 = vmatpush1.bf16.msra.mxu0 %v793
        %921 = vmatprep.subr.bf16.mxu0 %v790
        %922 = vmatpush1.bf16.msra.mxu0 %v789
        %923 = vmatprep.subr.bf16.mxu0 %v786
        %924 = vmatpush1.bf16.msra.mxu0 %v785
        %925 = vmatprep.subr.bf16.mxu0 0
        %926 = vmatpush2.bf16.msra.mxu0 0
        %927 = vmatprep.subr.bf16.mxu0 0
        %928 = vmatpush2.bf16.msra.mxu0 0
        %929 = vmatprep.subr.bf16.mxu0 0
        %930 = vmatpush2.bf16.msra.mxu0 0
        %931 = vmatprep.subr.bf16.mxu0 0
        %932 = vmatpush2.bf16.msra.mxu0 0
        %933 = vmatprep.subr.bf16.mxu0 0
        %934 = vmatpush2.bf16.msra.mxu0 0
        %935 = vmatprep.subr.bf16.mxu0 0
        %936 = vmatpush2.bf16.msra.mxu0 0
        %937 = vmatprep.subr.bf16.mxu0 0
        %938 = vmatpush2.bf16.msra.mxu0 0
        %939 = vmatprep.subr.bf16.mxu0 0
        %940 = vmatpush2.bf16.msra.mxu0 0
        %941 = vmatprep.mubr.bf16.mxu0 0
        %942 = vmatmul.mubr.bf16.gmra.mxu0 %v653
        %v943 = vpop.f32.mrf.mxu0
        %v944 = vadd.f32 %v859, %v943
        %v945 = vpop.f32.mrf.mxu0
        %v946 = vadd.f32 %v863, %v945
        %v947 = vpop.f32.mrf.mxu0
        %v948 = vpop.f32.mrf.mxu0
        %949 = vdwg.mxu0
        %v950 = vlaneseq
        %v951 = vshrl.u32 %v950, 7
        %v952 = vsub.s32 0, %v951
        %v953 = vrot.slane %v903, %v952
        %v954 = vadd.f32 %v602, %v953
        %v955 = vadd.f32 %v606, %v953
        %v956 = vmul.f32 %v954, 0.5
        %v957 = vmul.f32 %v955, 0.5
        %v958 = vtanh.pop %v956
        %v959 = vtanh.pop %v957
        %v960 = vmul.f32 %v958, 0.5
        %v961 = vmul.f32 %v959, 0.5
        %v962 = vadd.f32 %v960, 0.5
        %v963 = vadd.f32 %v961, 0.5
        %v964 = vlaneseq
        %v965 = vshrl.u32 %v964, 7
        %v966 = vsub.s32 0, %v965
        %v967 = vrot.slane %v905, %v966
        %v968 = vadd.f32 %v604, %v967
        %v969 = vadd.f32 %v608, %v967
        %v970 = vmul.f32 %v968, 0.5
        %v971 = vmul.f32 %v969, 0.5
        %v972 = vtanh.pop %v970
        %v973 = vtanh.pop %v971
        %v974 = vmul.f32 %v972, 0.5
        %v975 = vmul.f32 %v973, 0.5
        %v976 = vadd.f32 %v974, 0.5
        %v977 = vadd.f32 %v975, 0.5
        %v978 = vlaneseq
        %v979 = vshrl.u32 %v978, 7
        %v980 = vsub.s32 0, %v979
        %v981 = vrot.slane %v944, %v980
        %v982 = vadd.f32 %v645, %v981
        %v983 = vadd.f32 %v649, %v981
        %v984 = vtanh.pop %v982
        %v985 = vtanh.pop %v983
        %v986 = vlaneseq
        %v987 = vshrl.u32 %v986, 7
        %v988 = vsub.s32 0, %v987
        %v989 = vrot.slane %v946, %v988
        %v990 = vadd.f32 %v647, %v989
        %v991 = vadd.f32 %v651, %v989
        %v992 = vmul.f32 %v990, 0.5
        %v993 = vmul.f32 %v991, 0.5
        %v994 = vtanh.pop %v992
        %v995 = vtanh.pop %v993
        %v996 = vmul.f32 %v994, 0.5
        %v997 = vmul.f32 %v995, 0.5
        %v998 = vadd.f32 %v996, 0.5
        %v999 = vadd.f32 %v997, 0.5
        %v1000 = vld [vmem:[%s365] sm:$0x1]
        %v1002 = vlaneseq
        %v1003 = vshrl.u32 %v1002, 7
        %v1004 = vsub.s32 0, %v1003
        %v1005 = vrot.slane %v1000, %v1004
        %v1007 = vmul.f32 %v976, %v1005
        %v1008 = vmul.f32 %v977, %v1005
        %v1009 = vmul.f32 %v962, %v984
        %v1010 = vmul.f32 %v963, %v985
        %v1011 = vadd.f32 %v1007, %v1009
        %v1012 = vadd.f32 %v1008, %v1010
        %v1013 = vtanh.pop %v1011
        %v1014 = vtanh.pop %v1012
        %v1015 = vmul.f32 %v998, %v1013
        %v1016 = vmul.f32 %v999, %v1014
        %v1017 = vpack.c.bf16 %v1016, %v1015
        %v1019 = vunpack.c.l.b16 %v1017
        %v1020 = vunpack.c.h.b16 %v1017
        %v1021 = vpack.c.b16 %v1019, %v1019
        %v1022 = vpack.c.b16 %v1020, %v1020
        %1025 = vst [vmem:[%s351] sm:$0xf] %v1021
        %1026 = vst [vmem:[%s351 + $0x4] sm:$0xf] %v1022
        %v1027 = vpack.c.bf16 %v1012, %v1011
        %v1029 = vunpack.c.l.b16 %v1027
        %v1030 = vunpack.c.h.b16 %v1027
        %v1031 = vpack.c.b16 %v1029, %v1029
        %v1032 = vpack.c.b16 %v1030, %v1030
        %1035 = vst [vmem:[%s358] sm:$0xf] %v1031
        %1036 = vst [vmem:[%s358 + $0x4] sm:$0xf] %v1032
        %s1037 = sand.u32 %s178, 1
        %s1038 = scalar_lea.sflag [#allocation4], %s1037
        %s1039 = sand.u32 %s178, 1
        %s1040 = smul.addr %s1039, 8
        %s1041 = scalar_lea.vmem [#allocation8], %s1040
        %s1042 = sand.u32 %s204, 1
        %s1043 = scalar_lea.sflag [#allocation10], %s1042
        %s1044 = sand.u32 %s204, 1
        %s1045 = smul.addr %s1044, 8
        %s1046 = scalar_lea.vmem [#allocation9], %s1045
        // Predicated region
        $region57: #{tpu_custom_call.1} parent=43 // pred_check
          %p1047 = pneg %p188
        $region58: #{tpu_custom_call.1} parent=43 // pred_check_branch
          %1049 = sbr.rel (%p1047) target = $region60
        $region59: #{tpu_custom_call.1} parent=43 // pred_region
          %s1051 = ssub.s32 128, 128
          %1052 = vsyncadd %s1038, %s1051
          %s1053 = smul.addr %s29, 2
          %s1054 = smul.addr %s1053, 64
          %s1055 = scalar_lea.hbm %s6, %s1054
          %s1056 = sshll.u32 %s1041, 4
          %s1057 = int_to_ptr.vmem [resolvable:$true] %s1056
          %1062 = dma.vmem_to_hbm [thread:$0]  %s1057, 128, %s1055, %s1038, 64, 64, 4
        $region60: #{tpu_custom_call.1} parent=43 // pred_fallthru
          _
        // Predicated region
        $region61: #{tpu_custom_call.1} parent=43 // pred_check
          %p1063 = pneg %p214
        $region62: #{tpu_custom_call.1} parent=43 // pred_check_branch
          %1065 = sbr.rel (%p1063) target = $region64
        $region63: #{tpu_custom_call.1} parent=43 // pred_region
          %s1067 = ssub.s32 128, 128
          %1068 = vsyncadd %s1043, %s1067
          %s1069 = smul.addr %s29, 2
          %s1070 = smul.addr %s1069, 64
          %s1071 = scalar_lea.hbm %s7, %s1070
          %s1072 = sshll.u32 %s1046, 4
          %s1073 = int_to_ptr.vmem [resolvable:$true] %s1072
          %1078 = dma.vmem_to_hbm [thread:$0]  %s1073, 128, %s1071, %s1043, 64, 64, 4
        $region64: #{tpu_custom_call.1} parent=43 // pred_fallthru
          _
      $region44: #{tpu_custom_call.1} parent=5 // pred_fallthru
        _
      %p1079 = scmp.le.s32.totalorder 2, %s24
      // Predicated region
      $region65: #{tpu_custom_call.1} parent=5 // pred_check
        %p1080 = pneg %p1079
      $region66: #{tpu_custom_call.1} parent=5 // pred_check_branch
        %1082 = sbr.rel (%p1080) target = $region68
      $region67: #{tpu_custom_call.1} parent=5 // pred_region
        %s1083 = ssub.s32 %s24, 2
        // Predicated region
        $region69: #{tpu_custom_call.1} parent=67 // pred_check
          %p1084 = pneg %p194
        $region70: #{tpu_custom_call.1} parent=67 // pred_check_branch
          %1086 = sbr.rel (%p1084) target = $region72
        $region71: #{tpu_custom_call.1} parent=67 // pred_region
          %s1087 = sand.u32 %s179, 1
          %s1088 = scalar_lea.sflag [#allocation4], %s1087
          %s1089 = sand.u32 %s179, 1
          %s1090 = smul.addr %s1089, 8
          %s1091 = scalar_lea.vmem [#allocation8], %s1090
          %1092 = dma.done %s1088, 128
        $region72: #{tpu_custom_call.1} parent=67 // pred_fallthru
          _
        // Predicated region
        $region73: #{tpu_custom_call.1} parent=67 // pred_check
          %p1093 = pneg %p220
        $region74: #{tpu_custom_call.1} parent=67 // pred_check_branch
          %1095 = sbr.rel (%p1093) target = $region76
        $region75: #{tpu_custom_call.1} parent=67 // pred_region
          %s1096 = sand.u32 %s205, 1
          %s1097 = scalar_lea.sflag [#allocation10], %s1096
          %s1098 = sand.u32 %s205, 1
          %s1099 = smul.addr %s1098, 8
          %s1100 = scalar_lea.vmem [#allocation9], %s1099
          %1101 = dma.done %s1097, 128
        $region76: #{tpu_custom_call.1} parent=67 // pred_fallthru
          _
      $region68: #{tpu_custom_call.1} parent=5 // pred_fallthru
        _
    $region6: #{tpu_custom_call.1} parent=1 // loop_footer
      %s28 = sadd.s32 1, %s24
    $region7: #{tpu_custom_call.1} parent=1 // loop_footer_branch
      %23 = sbr.rel target = $region3
    $region8: #{tpu_custom_call.1} parent=1 // loop_exit
      _
    %1102 = vsyncpa [#allocation3], 1
    %s1103 = scalar_lea.sflag [#allocation3], 1
    %1104 = vsyncpa %s1103, 1
    %1105 = vsyncpa [#allocation6], 1
    %1106 = vsyncpa [#allocation4], 1
    %s1107 = scalar_lea.sflag [#allocation4], 1
    %1108 = vsyncpa %s1107, 1
    %1109 = vsyncpa [#allocation10], 1
    %s1110 = scalar_lea.sflag [#allocation10], 1
    %1111 = vsyncpa %s1110, 1

</llo_original>
